<compile_context>
chip_gen: v7x
topology: tpu7x:2x2x1
jax: 0.10.0
libtpu: 0.0.40
codegen_flags: <defaults>
</compile_context>

<pallas_src>
import jax
import jax.numpy as jnp
from jax.experimental import pallas as pl
from jax.experimental.pallas import tpu as pltpu


def _round_up(n: int, m: int) -> int:
    return ((n + m - 1) // m) * m


def _sublane_multiple(bytes_per_elem: int) -> int:
    # Rows packed per vreg: f32 -> 8, bf16/fp16 -> 16, int8/fp8 -> 32.
    return max(8, 32 // bytes_per_elem)


def _target_tile_bytes() -> int:
    """Generation-aware target size for one x tile of this streaming kernel."""
    try:
        kind = jax.devices()[0].device_kind.lower()
    except Exception:
        kind = ""
    if "v7" in kind:
        return 7 << 20          # 3.2 TB/s HBM: bigger tiles amortize step cost
    if "v6" in kind:
        return 4 << 20
    if "v5" in kind:
        return 5 << 19          # 2.5 MiB: v5e scoped-VMEM default is only 16 MiB
    return 3 << 20              # conservative default (v4 / unknown)


def _choose_blocks(rows: int, lanes: int, bytes_per_elem: int, target_bytes: int):
    """Pick (R, TL): lane-dense, ~target_bytes padded footprint, (8,128)-safe."""
    sub = _sublane_multiple(bytes_per_elem)
    lanes_padded = _round_up(lanes, 128)

    # Lane (last) dim: prefer the FULL extent (unmasked stores, no ragged tail)
    # whenever `sub` full-lane rows fit within ~2x the target.
    if lanes <= 128 or sub * lanes_padded * bytes_per_elem <= 2 * target_bytes:
        tl = lanes
    else:
        tl = (target_bytes // (sub * bytes_per_elem * 128)) * 128
        tl = max(128, tl)
        if tl >= lanes:
            tl = lanes
    tl_padded = _round_up(tl, 128)

    # Row (second-to-last) dim: dtype-aware sublane multiple, padded accounting.
    rows_per_block = max(1, target_bytes // (tl_padded * bytes_per_elem))
    if rows_per_block >= rows:
        r = rows                                  # full extent -> always legal
    else:
        r = max(sub, (rows_per_block // sub) * sub)
        r = min(r, rows)

    # Megacore: if the row axis degenerates to a single block, split it so a
    # second TensorCore (v7x) gets work.
    if r == rows and rows >= 2 * sub and tl == lanes:
        r = _round_up(-(-rows // 2), sub)

    return r, tl


def _normalize_kernel(x_ref, mean_ref, inv_std_ref, o_ref):
    # x_ref: (R, TL); mean_ref / inv_std_ref: (R, 1) f32 -> broadcast over lanes.
    x = x_ref[...].astype(jnp.float32)
    o_ref[...] = ((x - mean_ref[...]) * inv_std_ref[...]).astype(o_ref.dtype)


def normalize(x: jax.Array, mean: jax.Array, std: jax.Array) -> jax.Array:
    """x: (N, C, H, W); mean, std: (C,). Returns (x - mean_c) / std_c."""
    N, C, H, W = x.shape
    rows = N * C
    lanes = H * W
    bpe = jnp.dtype(x.dtype).itemsize
    sub = _sublane_multiple(bpe)

    # Lane-dense 2D view of the contiguous NCHW tensor (free reshape).
    x2d = x.reshape(rows, lanes)

    # Per-row (= per (n, c)) params kept in f32; reciprocal computed once in
    # the wrapper so the kernel is a subtract + multiply.
    mean_rows = jnp.tile(mean.astype(jnp.float32), N).reshape(rows, 1)
    inv_std_rows = jnp.tile(1.0 / std.astype(jnp.float32), N).reshape(rows, 1)

    target_bytes = _target_tile_bytes()
    R, TL = _choose_blocks(rows, lanes, bpe, target_bytes)

    # Grid order: row blocks outer, lane blocks inner -> the (R,1) param block
    # index is invariant over the inner loop, so Pallas skips re-DMA of params.
    grid = (pl.cdiv(rows, R), pl.cdiv(lanes, TL))

    # Padded VMEM footprint: (in + out) double-buffered + lane-padded f32 param
    # columns double-buffered, plus slack.
    x_tile_bytes = _round_up(R, sub) * _round_up(TL, 128) * bpe
    param_tile_bytes = _round_up(R, 8) * 128 * 4
    footprint = 2 * (2 * x_tile_bytes) + 2 * (2 * param_tile_bytes)
    vmem_limit = min(max(footprint + (4 << 20), 32 << 20), 48 << 20)

    cost = pl.CostEstimate(
        flops=2 * rows * lanes,
        transcendentals=0,
        bytes_accessed=2 * rows * lanes * bpe + 2 * rows * 4,
    )

    out2d = pl.pallas_call(
        _normalize_kernel,
        out_shape=jax.ShapeDtypeStruct((rows, lanes), x.dtype),
        grid=grid,
        in_specs=[
            pl.BlockSpec((R, TL), lambda i, j: (i, j)),   # x tile
            pl.BlockSpec((R, 1), lambda i, j: (i, 0)),    # mean column (f32)
            pl.BlockSpec((R, 1), lambda i, j: (i, 0)),    # 1/std column (f32)
        ],
        out_specs=pl.BlockSpec((R, TL), lambda i, j: (i, j)),
        compiler_params=pltpu.CompilerParams(
            dimension_semantics=("parallel", "parallel"),
            vmem_limit_bytes=vmem_limit,
        ),
        cost_estimate=cost,
    )(x2d, mean_rows, inv_std_rows)

    return out2d.reshape(N, C, H, W)


if __name__ == "__main__":
    # Deterministic "parameters" (the module's __init__ just stores mean/std).
    C = 4
    mean = jnp.array([0.485, 0.456, 0.406, 0.5], dtype=jnp.float32)
    std = jnp.array([0.229, 0.224, 0.225, 0.25], dtype=jnp.float32)

    key = jax.random.PRNGKey(0)
    x = jax.random.normal(key, (2, C, 16, 16), dtype=jnp.float32)

    out = normalize(x, mean, std)
    out = jax.block_until_ready(out)

    # Reference check in plain JAX (same semantics as the PyTorch forward).
    ref = (x - mean[None, :, None, None]) / std[None, :, None, None]
    assert out.shape == x.shape and out.dtype == x.dtype
    assert jnp.allclose(out, ref, atol=1e-6, rtol=1e-6)

    print("KERNEL_OK")
</pallas_src>

<mosaic_0001>
module attributes {stable_mosaic.version = 11 : i64} {
  func.func @_normalize_kernel(%arg0: i32, %arg1: i32, %arg2: memref<8x256xf32, #tpu.memory_space<vmem>>, %arg3: memref<8x1xf32, #tpu.memory_space<vmem>>, %arg4: memref<8x1xf32, #tpu.memory_space<vmem>>, %arg5: memref<8x256xf32, #tpu.memory_space<vmem>>) attributes {dimension_semantics = [#tpu.dimension_semantics<parallel>, #tpu.dimension_semantics<parallel>], iteration_bounds = array<i64: 1, 1>, scalar_prefetch = 0 : i64, scratch_operands = 0 : i64, tpu.core_type = #tpu.core_type<tc>, window_params = [{transform_indices = @transform_0, window_bounds = array<i64: 8, 256>}, {transform_indices = @transform_1, window_bounds = array<i64: 8, 1>}, {transform_indices = @transform_2, window_bounds = array<i64: 8, 1>}, {transform_indices = @transform_3, window_bounds = array<i64: 8, 256>}]} {
    %c0 = arith.constant 0 : index
    %c0_0 = arith.constant 0 : index
    %0 = vector.load %arg2[%c0, %c0_0] : memref<8x256xf32, #tpu.memory_space<vmem>>, vector<8x256xf32>
    %c0_1 = arith.constant 0 : index
    %c0_2 = arith.constant 0 : index
    %1 = vector.load %arg3[%c0_1, %c0_2] : memref<8x1xf32, #tpu.memory_space<vmem>>, vector<8x1xf32>
    %2 = vector.broadcast %1 : vector<8x1xf32> to vector<8x256xf32>
    %3 = arith.subf %0, %2 : vector<8x256xf32>
    %c0_3 = arith.constant 0 : index
    %c0_4 = arith.constant 0 : index
    %4 = vector.load %arg4[%c0_3, %c0_4] : memref<8x1xf32, #tpu.memory_space<vmem>>, vector<8x1xf32>
    %5 = vector.broadcast %4 : vector<8x1xf32> to vector<8x256xf32>
    %6 = arith.mulf %3, %5 : vector<8x256xf32>
    %c0_5 = arith.constant 0 : index
    %c0_6 = arith.constant 0 : index
    %7 = vector.load %arg5[%c0_5, %c0_6] : memref<8x256xf32, #tpu.memory_space<vmem>>, vector<8x256xf32>
    tpu.vector_store %arg5[%c0_5, %c0_6], %6 {strides = array<i32>} : memref<8x256xf32, #tpu.memory_space<vmem>>, vector<8x256xf32>,
    return
  }
  func.func @transform_0(%arg0: i32, %arg1: i32) -> (i32, i32) {
    %c0_i32 = arith.constant 0 : i32
    return %arg0, %arg1 : i32, i32
  }
  func.func @transform_1(%arg0: i32, %arg1: i32) -> (i32, i32) {
    %c0_i32 = arith.constant 0 : i32
    %c0_i32_0 = arith.constant 0 : i32
    return %arg0, %c0_i32 : i32, i32
  }
  func.func @transform_2(%arg0: i32, %arg1: i32) -> (i32, i32) {
    %c0_i32 = arith.constant 0 : i32
    %c0_i32_0 = arith.constant 0 : i32
    return %arg0, %c0_i32 : i32, i32
  }
  func.func @transform_3(%arg0: i32, %arg1: i32) -> (i32, i32) {
    %c0_i32 = arith.constant 0 : i32
    return %arg0, %arg1 : i32, i32
  }
}

</mosaic_0001>

<llo_original>
// kernel: tpu_custom_call.1
$region0: #{tpu_custom_call.1}
  #allocation0 [shape = 'u32[]', space=smem, size = 0x4, offset = 0x4, fixed_abs, tag = 'smem constant byte address 0x4 - core index']
  #allocation1 [shape = 'u32[144,128]{1,0:T(1,128)}', space=vmem, size = 0x12000, scoped, tag = 'internal scratch']
  %s0 = inlined_call_operand.vmem [shape: f32[8,256], index: 0, kind: input, shape index: {}]
  %s1 = inlined_call_operand.vmem [shape: f32[8,1], index: 1, kind: input, shape index: {}]
  %s2 = inlined_call_operand.vmem [shape: f32[8,1], index: 2, kind: input, shape index: {}]
  %s3 = inlined_call_operand.hbm [shape: f32[8,256], index: 3, kind: output, shape index: {}]
  %s4 = sld [smem:[#allocation0]]
  $region22: #{tpu_custom_call.1} parent=0
    _
  %s6 = ssub.s32 1, %s4
  %s7 = scalar_select 0, %s6, %s4
  $region1: #{tpu_custom_call.1} parent=0
    #allocation2 [shape = 'u8[8192]{0}', space=vmem, size = 0x2000, scoped, tag = 'output window, operand 0, single buffered']
    #allocation3 [shape = 's32[1]{0}', space=sflag, size = 0x4, scoped, tag = 'scoped memory for tpu_custom_call.1']
    %8 = vsyncpa [#allocation3], 0
    // Predicated region
    $region2: #{tpu_custom_call.1} parent=1 // pred_check
      _
    $region3: #{tpu_custom_call.1} parent=1 // pred_check_branch
      %10 = sbr.rel (0) target = $region5
    $region4: #{tpu_custom_call.1} parent=1 // pred_region
      _
    $region5: #{tpu_custom_call.1} parent=1 // pred_fallthru
      _
    // Predicated region
    $region6: #{tpu_custom_call.1} parent=1 // pred_check
      _
    $region7: #{tpu_custom_call.1} parent=1 // pred_check_branch
      %12 = sbr.rel (0) target = $region9
    $region8: #{tpu_custom_call.1} parent=1 // pred_region
      _
    $region9: #{tpu_custom_call.1} parent=1 // pred_fallthru
      _
    // Predicated region
    $region10: #{tpu_custom_call.1} parent=1 // pred_check
      _
    $region11: #{tpu_custom_call.1} parent=1 // pred_check_branch
      %14 = sbr.rel (0) target = $region13
    $region12: #{tpu_custom_call.1} parent=1 // pred_region
      _
    $region13: #{tpu_custom_call.1} parent=1 // pred_fallthru
      _
    %v15 = vld [vmem:[%s0] sm:$0xff]
    %v16 = vld [vmem:[%s0 + $0x8] sm:$0xff]
    %v17 = vld [vmem:[%s1] sm:$0xff]
    %19 = vset.pattern.permute.xlu0 0
    %20 = vperm.xlu0 %19, %v17
    %v21 = vpop.permute.xlu0 %20
    %v23 = vsub.f32 %v15, %v21
    %v24 = vsub.f32 %v16, %v21
    %v25 = vld [vmem:[%s2] sm:$0xff]
    %27 = vset.pattern.permute.xlu0 0
    %28 = vperm.xlu0 %27, %v25
    %v29 = vpop.permute.xlu0 %28
    %v31 = vmul.f32 %v23, %v29
    %v32 = vmul.f32 %v24, %v29
    %33 = vst [vmem:[#allocation2] sm:$0xff] %v31
    %34 = vst [vmem:[#allocation2 + $0x8] sm:$0xff] %v32
    // Predicated region
    $region14: #{tpu_custom_call.1} parent=1 // pred_check
      _
    $region15: #{tpu_custom_call.1} parent=1 // pred_check_branch
      %36 = sbr.rel (0) target = $region17
    $region16: #{tpu_custom_call.1} parent=1 // pred_region
      %s38 = ssub.s32 256, 256
      %39 = vsyncadd [#allocation3], %s38
      %s41 = sshll.u32 [#allocation2], 4
      %s42 = int_to_ptr.vmem [resolvable:$true] %s41
      %44 = dma.vmem_to_hbm [thread:$0]  %s42, 256, %s3, [#allocation3]
    $region17: #{tpu_custom_call.1} parent=1 // pred_fallthru
      _
    // Predicated region
    $region18: #{tpu_custom_call.1} parent=1 // pred_check
      _
    $region19: #{tpu_custom_call.1} parent=1 // pred_check_branch
      %46 = sbr.rel (0) target = $region21
    $region20: #{tpu_custom_call.1} parent=1 // pred_region
      %47 = dma.done [#allocation3], 256
    $region21: #{tpu_custom_call.1} parent=1 // pred_fallthru
      _
    %48 = vsyncpa [#allocation3], 1

</llo_original>
